<compile_context>
chip_gen: v7x
topology: tpu7x:2x2x1
jax: 0.10.0
libtpu: 0.0.40
codegen_flags: <defaults>
</compile_context>

<pallas_src>
import math

import numpy as np
import jax
import jax.numpy as jnp
from jax.experimental import pallas as pl
from jax.experimental.pallas import tpu as pltpu

# ---- module hyper-parameters (defaults of TimeEmbbeding) ----
EMB_DIM = 64                 # output embedding dim
POS_EMB_DIM = EMB_DIM // 4   # = 16, sinusoidal embedding dim
HALF_DIM = POS_EMB_DIM // 2  # = 8
MAX_PERIOD = 10000
DOWNSCALE_FREQ_SHIFT = 1
FLIP_SIN_TO_COS = False      # default of SinusoidalPosEmb

LANES = 2 * EMB_DIM          # 128: folded (2-batch-rows-per-row) lane width
PARAM_ROWS = 8 + 128 + 128   # header tile + block-embedded W1 + block-diag W2


def _round_up(x, m):
    return ((x + m - 1) // m) * m


def _build_freq_phase(half_dim, max_period, freq_shift, flip_sin_to_cos):
    """Compile-time constants: (2H,) frequency table and (2H,) phase.

    pe = sin(t * freqs_full + phase) reproduces torch.cat((sin, cos), -1)
    (or (cos, sin) when flip_sin_to_cos=True) without any in-kernel concat.
    """
    scale = math.log(max_period) / (half_dim - freq_shift)
    f = np.exp(-scale * np.arange(half_dim, dtype=np.float64)).astype(np.float32)
    freqs_full = np.concatenate([f, f]).astype(np.float32)              # (2H,)
    sin_phase = np.zeros(half_dim, dtype=np.float32)
    cos_phase = np.full(half_dim, np.pi / 2.0, dtype=np.float32)
    if flip_sin_to_cos:
        phase = np.concatenate([cos_phase, sin_phase])                  # [cos | sin]
    else:
        phase = np.concatenate([sin_phase, cos_phase])                  # [sin | cos]
    return freqs_full, phase


def pack_time_emb_params(w1, b1, w2, b2):
    """Pack sinusoidal constants + both Linear layers into one (264, 128) f32 slab.

    w1: [POS_EMB_DIM, EMB_DIM], b1: [EMB_DIM], w2: [EMB_DIM, EMB_DIM], b2: [EMB_DIM]
    (weights already transposed vs. torch.nn.Linear).

    Slab layout (rows x 128 lanes):
      row 0      : freqs for the even batch element (lanes 0..15)
      row 1      : freqs for the odd  batch element (lanes 16..31)
      row 2      : sin/cos phase, tiled twice        (lanes 0..31)
      row 3      : b1 tiled twice                    (lanes 0..127)
      row 4      : b2 tiled twice                    (lanes 0..127)
      rows 5..7  : zero padding (sublane alignment)
      rows 8..135: W1 block-embedded: [0:16,0:64]=w1, [16:32,64:128]=w1, else 0
      rows 136..263: W2 block-diagonal: [0:64,0:64]=w2, [64:128,64:128]=w2, else 0
    """
    f32 = jnp.float32
    freqs_full, phase = _build_freq_phase(
        HALF_DIM, MAX_PERIOD, DOWNSCALE_FREQ_SHIFT, FLIP_SIN_TO_COS)
    freqs_j = jnp.asarray(freqs_full, f32)
    phase_j = jnp.asarray(phase, f32)
    b1f = b1.astype(f32)
    b2f = b2.astype(f32)
    w1f = w1.astype(f32)
    w2f = w2.astype(f32)

    header = jnp.zeros((8, LANES), f32)
    header = header.at[0, 0:POS_EMB_DIM].set(freqs_j)
    header = header.at[1, POS_EMB_DIM:2 * POS_EMB_DIM].set(freqs_j)
    header = header.at[2, 0:POS_EMB_DIM].set(phase_j)
    header = header.at[2, POS_EMB_DIM:2 * POS_EMB_DIM].set(phase_j)
    header = header.at[3, 0:EMB_DIM].set(b1f).at[3, EMB_DIM:2 * EMB_DIM].set(b1f)
    header = header.at[4, 0:EMB_DIM].set(b2f).at[4, EMB_DIM:2 * EMB_DIM].set(b2f)

    w1pad = jnp.zeros((128, LANES), f32)
    w1pad = w1pad.at[0:POS_EMB_DIM, 0:EMB_DIM].set(w1f)
    w1pad = w1pad.at[POS_EMB_DIM:2 * POS_EMB_DIM, EMB_DIM:2 * EMB_DIM].set(w1f)

    w2blk = jnp.zeros((128, LANES), f32)
    w2blk = w2blk.at[0:EMB_DIM, 0:EMB_DIM].set(w2f)
    w2blk = w2blk.at[EMB_DIM:2 * EMB_DIM, EMB_DIM:2 * EMB_DIM].set(w2f)

    return jnp.concatenate([header, w1pad, w2blk], axis=0)   # (264, 128)


def _time_emb_kernel(t_ref, p_ref, out_ref):
    # Folded layout: output row r = [out[2r] (64 lanes) | out[2r+1] (64 lanes)].
    t2 = t_ref[...]                                   # (TB, 2) f32: [t[2r], t[2r+1]]

    f0    = p_ref[0:1, :]                             # (1,128) freqs, even element (lanes 0..15)
    f1    = p_ref[1:2, :]                             # (1,128) freqs, odd  element (lanes 16..31)
    phase = p_ref[2:3, :]                             # (1,128) 0 / pi/2 (cos x = sin(x + pi/2))
    b1    = p_ref[3:4, :]                             # (1,128) b1 tiled
    b2    = p_ref[4:5, :]                             # (1,128) b2 tiled
    w1    = p_ref[8:136, :]                           # (128,128) block-embedded Linear1
    w2    = p_ref[136:264, :]                         # (128,128) block-diagonal Linear2

    # ---- sinusoidal positional embedding, both batch elements in one 128-lane row ----
    arg = t2[:, 0:1] * f0 + t2[:, 1:2] * f1 + phase   # (TB, 128); lanes >= 32 stay 0
    pe = jnp.sin(arg)                                 # lanes >= 32: sin(0) = 0 -> dead rows of w1

    # ---- Linear(pos_emb_dim -> emb_dim) + SiLU (both elements at once) ----
    h = jnp.dot(pe, w1, preferred_element_type=jnp.float32) + b1
    h = h * jax.nn.sigmoid(h)                         # SWISH / SiLU

    # ---- Linear(emb_dim -> emb_dim) ----
    out = jnp.dot(h, w2, preferred_element_type=jnp.float32) + b2
    out_ref[...] = out.astype(out_ref.dtype)


def time_embedding(time, packed_params, *, block_rows=None, out_dtype=jnp.float32):
    """time: [B] float32, packed_params: pack_time_emb_params(...) -> [B, EMB_DIM]."""
    B = time.shape[0]
    fold_rows = -(-B // 2)                      # ceil(B/2): folded (2-per-row) batch rows
    fold_rows8 = _round_up(fold_rows, 8)

    if block_rows is None:
        # Single grid step up to 2048 folded rows (batch 4096): best on 1-TC v5e/v6e.
        # Beyond that, 1024-row tiles (>= 2 parallel blocks -> both v7x TensorCores).
        block_rows = fold_rows8 if fold_rows8 <= 2048 else 1024
    tb = max(8, (min(block_rows, fold_rows8) // 8) * 8)
    fold_pad = _round_up(fold_rows8, tb)
    n_blocks = fold_pad // tb

    t = time.astype(jnp.float32)
    pad = 2 * fold_pad - B
    if pad:
        t = jnp.pad(t, (0, pad))
    t2 = t.reshape(fold_pad, 2)                 # row r = [t[2r], t[2r+1]]

    out = pl.pallas_call(
        _time_emb_kernel,
        out_shape=jax.ShapeDtypeStruct((fold_pad, LANES), out_dtype),
        grid_spec=pltpu.PrefetchScalarGridSpec(
            num_scalar_prefetch=0,
            grid=(n_blocks,),
            in_specs=[
                pl.BlockSpec((tb, 2), lambda i: (i, 0)),              # folded t
                pl.BlockSpec((PARAM_ROWS, LANES), lambda i: (0, 0)),  # packed params (resident)
            ],
            out_specs=pl.BlockSpec((tb, LANES), lambda i: (i, 0)),
        ),
        compiler_params=pltpu.CompilerParams(
            dimension_semantics=("parallel",)),
    )(t2, packed_params)

    out = out.reshape(2 * fold_pad, EMB_DIM)    # free row-major reshape
    return out[:B] if 2 * fold_pad != B else out


def _reference(time, w1, b1, w2, b2):
    half = HALF_DIM
    scale = math.log(MAX_PERIOD) / (half - DOWNSCALE_FREQ_SHIFT)
    freqs = jnp.exp(-scale * jnp.arange(half, dtype=jnp.float32))
    arg = time[:, None] * freqs[None, :]
    pe = jnp.concatenate([jnp.sin(arg), jnp.cos(arg)], axis=-1)
    h = pe @ w1 + b1
    h = h * jax.nn.sigmoid(h)
    return h @ w2 + b2


if __name__ == "__main__":
    key = jax.random.PRNGKey(0)
    k_t, k_w1, k_b1, k_w2, k_b2 = jax.random.split(key, 5)

    B = 8
    # deterministic synthetic parameters (torch-Linear-like scaling)
    time = jax.random.uniform(k_t, (B,), jnp.float32, 0.0, 1000.0)
    lim1 = 1.0 / math.sqrt(POS_EMB_DIM)
    lim2 = 1.0 / math.sqrt(EMB_DIM)
    w1 = jax.random.uniform(k_w1, (POS_EMB_DIM, EMB_DIM), jnp.float32, -lim1, lim1)
    b1 = jax.random.uniform(k_b1, (EMB_DIM,), jnp.float32, -lim1, lim1)
    w2 = jax.random.uniform(k_w2, (EMB_DIM, EMB_DIM), jnp.float32, -lim2, lim2)
    b2 = jax.random.uniform(k_b2, (EMB_DIM,), jnp.float32, -lim2, lim2)

    params = jax.block_until_ready(pack_time_emb_params(w1, b1, w2, b2))  # pack once

    out = jax.block_until_ready(time_embedding(time, params))
    ref = _reference(time, w1, b1, w2, b2)
    assert out.shape == (B, EMB_DIM)
    assert jnp.allclose(out, ref, atol=1e-4, rtol=1e-4), "mismatch vs reference"

    # exercise the gridded (multi-block) path with a non-multiple, odd-ish batch
    B2 = 300
    time2 = jax.random.uniform(jax.random.PRNGKey(1), (B2,), jnp.float32, 0.0, 1000.0)
    out2 = jax.block_until_ready(time_embedding(time2, params, block_rows=64))
    ref2 = _reference(time2, w1, b1, w2, b2)
    assert out2.shape == (B2, EMB_DIM)
    assert jnp.allclose(out2, ref2, atol=1e-4, rtol=1e-4), "mismatch vs reference (gridded)"

    print("KERNEL_OK")
</pallas_src>

<mosaic_0001>
module attributes {stable_mosaic.version = 11 : i64} {
  func.func @_time_emb_kernel(%arg0: i32, %arg1: memref<8x2xf32, #tpu.memory_space<vmem>>, %arg2: memref<264x128xf32, #tpu.memory_space<vmem>>, %arg3: memref<8x128xf32, #tpu.memory_space<vmem>>) attributes {dimension_semantics = [#tpu.dimension_semantics<parallel>], iteration_bounds = array<i64: 1>, scalar_prefetch = 0 : i64, scratch_operands = 0 : i64, tpu.core_type = #tpu.core_type<tc>, window_params = [{transform_indices = @transform_0, window_bounds = array<i64: 8, 2>}, {pipeline_mode = #tpu.pipeline_mode<synchronous>, transform_indices = @transform_1, window_bounds = array<i64: 264, 128>}, {transform_indices = @transform_2, window_bounds = array<i64: 8, 128>}]} {
    %c0 = arith.constant 0 : index
    %c0_0 = arith.constant 0 : index
    %0 = vector.load %arg1[%c0, %c0_0] : memref<8x2xf32, #tpu.memory_space<vmem>>, vector<8x2xf32>
    %c0_1 = arith.constant 0 : index
    %c0_2 = arith.constant 0 : index
    %1 = vector.load %arg2[%c0_1, %c0_2] : memref<264x128xf32, #tpu.memory_space<vmem>>, vector<1x128xf32>
    %c1 = arith.constant 1 : index
    %c0_3 = arith.constant 0 : index
    %2 = vector.load %arg2[%c1, %c0_3] : memref<264x128xf32, #tpu.memory_space<vmem>>, vector<1x128xf32>
    %c2 = arith.constant 2 : index
    %c0_4 = arith.constant 0 : index
    %3 = vector.load %arg2[%c2, %c0_4] : memref<264x128xf32, #tpu.memory_space<vmem>>, vector<1x128xf32>
    %c3 = arith.constant 3 : index
    %c0_5 = arith.constant 0 : index
    %4 = vector.load %arg2[%c3, %c0_5] : memref<264x128xf32, #tpu.memory_space<vmem>>, vector<1x128xf32>
    %c4 = arith.constant 4 : index
    %c0_6 = arith.constant 0 : index
    %5 = vector.load %arg2[%c4, %c0_6] : memref<264x128xf32, #tpu.memory_space<vmem>>, vector<1x128xf32>
    %c8 = arith.constant 8 : index
    %c0_7 = arith.constant 0 : index
    %6 = vector.load %arg2[%c8, %c0_7] : memref<264x128xf32, #tpu.memory_space<vmem>>, vector<128x128xf32>
    %c136 = arith.constant 136 : index
    %c0_8 = arith.constant 0 : index
    %7 = vector.load %arg2[%c136, %c0_8] : memref<264x128xf32, #tpu.memory_space<vmem>>, vector<128x128xf32>
    %8 = vector.extract_strided_slice %0 {offsets = [0, 0], sizes = [8, 1], strides = [1, 1]} : vector<8x2xf32> to vector<8x1xf32>
    %9 = vector.broadcast %8 : vector<8x1xf32> to vector<8x128xf32>
    %10 = vector.broadcast %1 : vector<1x128xf32> to vector<8x128xf32>
    %11 = arith.mulf %9, %10 : vector<8x128xf32>
    %12 = vector.extract_strided_slice %0 {offsets = [0, 1], sizes = [8, 1], strides = [1, 1]} : vector<8x2xf32> to vector<8x1xf32>
    %13 = vector.broadcast %12 : vector<8x1xf32> to vector<8x128xf32>
    %14 = vector.broadcast %2 : vector<1x128xf32> to vector<8x128xf32>
    %15 = arith.mulf %13, %14 : vector<8x128xf32>
    %16 = arith.addf %11, %15 : vector<8x128xf32>
    %17 = vector.broadcast %3 : vector<1x128xf32> to vector<8x128xf32>
    %18 = arith.addf %16, %17 : vector<8x128xf32>
    %19 = math.sin %18 : vector<8x128xf32>
    %cst = arith.constant dense<0.000000e+00> : vector<8x128xf32>
    %20 = tpu.matmul %19, %6, %cst {dimension_numbers = #tpu.dot_dimension_numbers<[1], [0], [0], [1], [0, 0, 1, 1], [], []>} : vector<8x128xf32>, vector<128x128xf32>, vector<8x128xf32> -> vector<8x128xf32>
    %21 = vector.broadcast %4 : vector<1x128xf32> to vector<8x128xf32>
    %22 = arith.addf %20, %21 : vector<8x128xf32>
    %23 = arith.negf %22 : vector<8x128xf32>
    %24 = math.exp %23 : vector<8x128xf32>
    %cst_9 = arith.constant 1.000000e+00 : f32
    %25 = vector.broadcast %cst_9 : f32 to vector<8x128xf32>
    %26 = arith.addf %25, %24 : vector<8x128xf32>
    %27 = arith.divf %25, %26 : vector<8x128xf32>
    %28 = arith.mulf %22, %27 : vector<8x128xf32>
    %cst_10 = arith.constant dense<0.000000e+00> : vector<8x128xf32>
    %29 = tpu.matmul %28, %7, %cst_10 {dimension_numbers = #tpu.dot_dimension_numbers<[1], [0], [0], [1], [0, 0, 1, 1], [], []>} : vector<8x128xf32>, vector<128x128xf32>, vector<8x128xf32> -> vector<8x128xf32>
    %30 = vector.broadcast %5 : vector<1x128xf32> to vector<8x128xf32>
    %31 = arith.addf %29, %30 : vector<8x128xf32>
    %c0_11 = arith.constant 0 : index
    %c0_12 = arith.constant 0 : index
    %32 = vector.load %arg3[%c0_11, %c0_12] : memref<8x128xf32, #tpu.memory_space<vmem>>, vector<8x128xf32>
    tpu.vector_store %arg3[%c0_11, %c0_12], %31 {strides = array<i32>} : memref<8x128xf32, #tpu.memory_space<vmem>>, vector<8x128xf32>,
    return
  }
  func.func @transform_0(%arg0: i32) -> (i32, i32) {
    %c0_i32 = arith.constant 0 : i32
    %c0_i32_0 = arith.constant 0 : i32
    return %arg0, %c0_i32 : i32, i32
  }
  func.func @transform_1(%arg0: i32) -> (i32, i32) {
    %c0_i32 = arith.constant 0 : i32
    %c0_i32_0 = arith.constant 0 : i32
    %c0_i32_1 = arith.constant 0 : i32
    return %c0_i32, %c0_i32_0 : i32, i32
  }
  func.func @transform_2(%arg0: i32) -> (i32, i32) {
    %c0_i32 = arith.constant 0 : i32
    %c0_i32_0 = arith.constant 0 : i32
    return %arg0, %c0_i32 : i32, i32
  }
}

</mosaic_0001>

<llo_original>
// kernel: tpu_custom_call.1
$region0: #{tpu_custom_call.1}
  #allocation0 [shape = 'u32[]', space=smem, size = 0x4, offset = 0x4, fixed_abs, tag = 'smem constant byte address 0x4 - core index']
  #allocation1 [shape = 'u32[144,128]{1,0:T(1,128)}', space=vmem, size = 0x12000, scoped, tag = 'internal scratch']
  %s0 = inlined_call_operand.vmem [shape: f32[8,2], index: 0, kind: input, shape index: {}]
  %s1 = inlined_call_operand.hbm [shape: f32[264,128], index: 1, kind: input, shape index: {}]
  %s2 = inlined_call_operand.hbm [shape: f32[8,128], index: 2, kind: output, shape index: {}]
  %s3 = sld [smem:[#allocation0]]
  $region22: #{tpu_custom_call.1} parent=0
    _
  %s5 = ssub.s32 1, %s3
  %s6 = scalar_select 0, %s5, %s3
  $region1: #{tpu_custom_call.1} parent=0
    #allocation2 [shape = 'u8[135168]{0}', space=vmem, size = 0x21000, scoped, tag = 'input window, operand 1, single buffered']
    #allocation3 [shape = 's32[1]{0}', space=sflag, size = 0x4, scoped, tag = 'scoped memory for tpu_custom_call.1']
    #allocation4 [shape = 's32[1]{0}', space=sflag, size = 0x4, scoped, tag = 'scoped memory for tpu_custom_call.1']
    #allocation5 [shape = 'u8[4096]{0}', space=vmem, size = 0x1000, scoped, tag = 'output window, operand 0, single buffered']
    %7 = vsyncpa [#allocation3], 0
    %8 = vsyncpa [#allocation4], 0
    // Predicated region
    $region2: #{tpu_custom_call.1} parent=1 // pred_check
      _
    $region3: #{tpu_custom_call.1} parent=1 // pred_check_branch
      %10 = sbr.rel (0) target = $region5
    $region4: #{tpu_custom_call.1} parent=1 // pred_region
      _
    $region5: #{tpu_custom_call.1} parent=1 // pred_fallthru
      _
    // Predicated region
    $region6: #{tpu_custom_call.1} parent=1 // pred_check
      _
    $region7: #{tpu_custom_call.1} parent=1 // pred_check_branch
      %12 = sbr.rel (0) target = $region9
    $region8: #{tpu_custom_call.1} parent=1 // pred_region
      %s14 = ssub.s32 4224, 4224
      %15 = vsyncadd [#allocation3], %s14
      %s16 = sshll.u32 [#allocation2], 4
      %s17 = int_to_ptr.vmem [resolvable:$true] %s16
      %22 = dma.hbm_to_vmem [thread:$0]  %s1, 4224, %s17, [#allocation3], 128, 128, 8
    $region9: #{tpu_custom_call.1} parent=1 // pred_fallthru
      _
    // Predicated region
    $region10: #{tpu_custom_call.1} parent=1 // pred_check
      _
    $region11: #{tpu_custom_call.1} parent=1 // pred_check_branch
      %24 = sbr.rel (0) target = $region13
    $region12: #{tpu_custom_call.1} parent=1 // pred_region
      %25 = dma.done [#allocation3], 4224
    $region13: #{tpu_custom_call.1} parent=1 // pred_fallthru
      _
    %v26 = vld [vmem:[%s0] sm:$0xff]
    %v27 = vld [vmem:[#allocation2] sm:$0x1]
    %v28 = vld [vmem:[#allocation2 + $0x1] sm:$0x1]
    %v29 = vld [vmem:[#allocation2 + $0x2] sm:$0x1]
    %v30 = vld [vmem:[#allocation2 + $0x3] sm:$0x1]
    %v31 = vld [vmem:[#allocation2 + $0x4] sm:$0x1]
    %v32 = vld [vmem:[#allocation2 + $0x8] sm:$0xff]
    %v33 = vld [vmem:[#allocation2 + $0x10] sm:$0xff]
    %v34 = vld [vmem:[#allocation2 + $0x18] sm:$0xff]
    %v35 = vld [vmem:[#allocation2 + $0x20] sm:$0xff]
    %v36 = vld [vmem:[#allocation2 + $0x28] sm:$0xff]
    %v37 = vld [vmem:[#allocation2 + $0x30] sm:$0xff]
    %v38 = vld [vmem:[#allocation2 + $0x38] sm:$0xff]
    %v39 = vld [vmem:[#allocation2 + $0x40] sm:$0xff]
    %v40 = vld [vmem:[#allocation2 + $0x48] sm:$0xff]
    %v41 = vld [vmem:[#allocation2 + $0x50] sm:$0xff]
    %v42 = vld [vmem:[#allocation2 + $0x58] sm:$0xff]
    %v43 = vld [vmem:[#allocation2 + $0x60] sm:$0xff]
    %v44 = vld [vmem:[#allocation2 + $0x68] sm:$0xff]
    %v45 = vld [vmem:[#allocation2 + $0x70] sm:$0xff]
    %v46 = vld [vmem:[#allocation2 + $0x78] sm:$0xff]
    %v47 = vld [vmem:[#allocation2 + $0x80] sm:$0xff]
    %v48 = vld [vmem:[#allocation2 + $0x88] sm:$0xff]
    %v49 = vld [vmem:[#allocation2 + $0x90] sm:$0xff]
    %v50 = vld [vmem:[#allocation2 + $0x98] sm:$0xff]
    %v51 = vld [vmem:[#allocation2 + $0xa0] sm:$0xff]
    %v52 = vld [vmem:[#allocation2 + $0xa8] sm:$0xff]
    %v53 = vld [vmem:[#allocation2 + $0xb0] sm:$0xff]
    %v54 = vld [vmem:[#allocation2 + $0xb8] sm:$0xff]
    %v55 = vld [vmem:[#allocation2 + $0xc0] sm:$0xff]
    %v56 = vld [vmem:[#allocation2 + $0xc8] sm:$0xff]
    %v57 = vld [vmem:[#allocation2 + $0xd0] sm:$0xff]
    %v58 = vld [vmem:[#allocation2 + $0xd8] sm:$0xff]
    %v59 = vld [vmem:[#allocation2 + $0xe0] sm:$0xff]
    %v60 = vld [vmem:[#allocation2 + $0xe8] sm:$0xff]
    %v61 = vld [vmem:[#allocation2 + $0xf0] sm:$0xff]
    %v62 = vld [vmem:[#allocation2 + $0xf8] sm:$0xff]
    %v63 = vld [vmem:[#allocation2 + $0x100] sm:$0xff]
    %65 = vset.pattern.permute.xlu0 0
    %66 = vperm.xlu0 %65, %v26
    %v67 = vpop.permute.xlu0 %66
    %v69 = vlaneseq
    %v70 = vshrl.u32 %v69, 7
    %v71 = vsub.s32 0, %v70
    %v72 = vrot.slane %v27, %v71
    %v73 = vmul.f32 %v67, %v72
    %74 = vset.pattern.permute.xlu0 1
    %75 = vperm.xlu0 %74, %v26
    %v76 = vpop.permute.xlu0 %75
    %v78 = vlaneseq
    %v79 = vshrl.u32 %v78, 7
    %v80 = vsub.s32 0, %v79
    %v81 = vrot.slane %v28, %v80
    %v82 = vmul.f32 %v76, %v81
    %v83 = vadd.f32 %v73, %v82
    %v84 = vlaneseq
    %v85 = vshrl.u32 %v84, 7
    %v86 = vsub.s32 0, %v85
    %v87 = vrot.slane %v29, %v86
    %v88 = vadd.f32 %v83, %v87
    %v89 = vand.u32 2147483647, %v88
    %vm90 = vcmp.le.f32.partialorder %v89, 0.7853982
    %vm91 = vcmp.lt.s32.totalorder %v88, 0
    %v92 = vand.u32 %v88, 2139095040
    %v93 = vshrl.u32 %v92, 23
    %v94 = vsub.s32 %v93, 127
    %v95 = vand.u32 2147483647, %v88
    %v96 = vand.u32 %v95, 8388607
    %v97 = vor.u32 %v96, 8388608
    %v98 = vsub.s32 0, %v97
    %v99 = vadd.s32 %v94, 1
    %vm100 = vcmp.gt.s32.totalorder %v99, 0
    %v101 = vsel %vm100, %v99, 0
    %v102 = vshrl.u32 %v101, 5
    %v103 = vand.u32 %v101, 31
    %v104 = vsub.s32 32, %v103
    %v105 = vshrl.u32 683565275, %v104
    %v106 = vshll.u32 683565275, %v103
    %v107 = vshrl.u32 2475754826, %v104
    %v108 = vor.u32 %v106, %v107
    %v109 = vshll.u32 2475754826, %v103
    %v110 = vshrl.u32 2131351028, %v104
    %v111 = vor.u32 %v109, %v110
    %v112 = vshll.u32 2131351028, %v103
    %v113 = vshrl.u32 2102212464, %v104
    %v114 = vor.u32 %v112, %v113
    %v115 = vshll.u32 2102212464, %v103
    %v116 = vshrl.u32 920167782, %v104
    %v117 = vor.u32 %v115, %v116
    %v118 = vshll.u32 920167782, %v103
    %v119 = vshrl.u32 1326507024, %v104
    %v120 = vor.u32 %v118, %v119
    %vm121 = vcmp.lt.s32.totalorder %v102, 1
    %vm122 = vcmp.lt.s32.totalorder %v102, 2
    %vm123 = vcmp.lt.s32.totalorder %v102, 3
    %vm124 = vcmp.lt.s32.totalorder %v102, 4
    %v125 = vsel %vm121, %v105, %v108
    %v126 = vsel %vm124, %v114, 2102212464
    %v127 = vsel %vm123, %v111, %v126
    %v128 = vsel %vm122, %v125, %v127
    %v129 = vsel %vm121, %v108, %v111
    %v130 = vsel %vm124, %v117, 920167782
    %v131 = vsel %vm123, %v114, %v130
    %v132 = vsel %vm122, %v129, %v131
    %v133 = vsel %vm121, %v111, %v114
    %v134 = vsel %vm124, %v120, 1326507024
    %v135 = vsel %vm123, %v117, %v134
    %v136 = vsel %vm122, %v133, %v135
    %v137 = vshll.u32 %v97, 8
    %v138 = vmul.u32.u64.compose %v137, %v136
    %v139 = vextract.low.u32 %v138
    %v140 = vextract.high.u32 %v138
    %v141 = vmul.u32.u64.compose %v137, %v132
    %v142 = vextract.low.u32 %v141
    %v143 = vextract.high.u32 %v141
    %v144 = vmul.u32 %v137, %v128
    %v145 = vadd.s32 %v140, %v142
    %vm146 = vc.u32 %v140, %v142
    %v147 = vadd.s32 %v143, 1
    %v148 = vsel %vm146, %v147, %v143
    %v149 = vadd.s32 %v144, %v148
    %v150 = vadd.s32 %v149, 536870912
    %v151 = vshrl.u32 %v150, 30
    %v152 = vshll.u32 %v151, 30
    %v153 = vsub.s32 %v149, %v152
    %vm154 = vcmp.lt.s32.totalorder %v153, 0
    %v155 = vsub.s32 0, %v153
    %v156 = vsel %vm154, %v155, %v153
    %v157 = vclz %v156
    %v158 = vsub.s32 %v157, 2
    %vm159 = vcmp.gt.s32.totalorder 0, %v158
    %v160 = vsel %vm159, 0, %v158
    %v161 = vsub.s32 32, %v160
    %v162 = vshll.u32 %v153, %v160
    %v163 = vshrl.u32 %v145, %v161
    %v164 = vor.u32 %v162, %v163
    %v165 = vsub.s32 4294967266, %v160
    %v166 = vadd.s32 %v165, 127
    %v167 = vshll.u32 %v166, 23
    %v168 = vor.u32 4788187, %v167
    %v169 = vand.u32 2147483647, %v168
    %v171 = vcvt.s32.f32 %v164
    %v172 = vmul.f32 %v171, %v169
    %v173 = vxor.u32 %v172, 2147483648
    %v174 = vsel %vm91, %v173, %v172
    %v175 = vsub.s32 4, %v151
    %v176 = vsel %vm91, %v175, %v151
    %v177 = vsel %vm90, %v88, %v174
    %v178 = vsel %vm90, 0, %v176
    %v179 = vcosq.f32.pop %v177
    %v180 = vsinq.f32.pop %v177
    %vm181 = vweird.f32 %v88
    %v182 = vadd.s32 %v178, 3
    %v183 = vand.u32 %v182, 3
    %vm184 = vcmp.lt.s32.totalorder %v183, 2
    %vm185 = vcmp.eq.s32.totalorder %v183, 0
    %v186 = vxor.u32 %v180, 2147483648
    %v187 = vsel %vm185, %v179, %v186
    %vm188 = vcmp.eq.s32.totalorder %v183, 2
    %v189 = vxor.u32 %v179, 2147483648
    %v190 = vsel %vm188, %v189, %v180
    %v191 = vsel %vm184, %v187, %v190
    %v192 = vsel %vm181, nan, %v191
    %v193 = vlaneseq
    %v194 = vshrl.u32 %v193, 7
    %v195 = vsub.s32 0, %v194
    %v196 = vrot.slane %v30, %v195
    %197 = vmatprep.subr.mxu0 0.0
    %198 = vmatpush1.msra.mxu0 %v32
    %199 = vmatprep.subr.mxu0 0.0
    %200 = vmatpush1.msra.mxu0 %v33
    %201 = vmatprep.subr.mxu0 0.0
    %202 = vmatpush1.msra.mxu0 %v34
    %203 = vmatprep.subr.mxu0 0.0
    %204 = vmatpush1.msra.mxu0 %v35
    %205 = vmatprep.subr.mxu0 0.0
    %206 = vmatpush1.msra.mxu0 %v36
    %207 = vmatprep.subr.mxu0 0.0
    %208 = vmatpush1.msra.mxu0 %v37
    %209 = vmatprep.subr.mxu0 0.0
    %210 = vmatpush1.msra.mxu0 %v38
    %211 = vmatprep.subr.mxu0 0.0
    %212 = vmatpush1.msra.mxu0 %v39
    %213 = vmatprep.subr.mxu0 0.0
    %214 = vmatpush1.msra.mxu0 %v40
    %215 = vmatprep.subr.mxu0 0.0
    %216 = vmatpush1.msra.mxu0 %v41
    %217 = vmatprep.subr.mxu0 0.0
    %218 = vmatpush1.msra.mxu0 %v42
    %219 = vmatprep.subr.mxu0 0.0
    %220 = vmatpush1.msra.mxu0 %v43
    %221 = vmatprep.subr.mxu0 0.0
    %222 = vmatpush1.msra.mxu0 %v44
    %223 = vmatprep.subr.mxu0 0.0
    %224 = vmatpush1.msra.mxu0 %v45
    %225 = vmatprep.subr.mxu0 0.0
    %226 = vmatpush1.msra.mxu0 %v46
    %227 = vmatprep.subr.mxu0 0.0
    %228 = vmatpush1.msra.mxu0 %v47
    %229 = vmatprep.subr.mxu0 0.0
    %230 = vmatpush1.msra.mxu0 0.0
    %231 = vmatprep.subr.mxu0 0.0
    %232 = vmatpush1.msra.mxu0 0.0
    %233 = vmatprep.subr.mxu0 0.0
    %234 = vmatpush1.msra.mxu0 0.0
    %235 = vmatprep.subr.mxu0 0.0
    %236 = vmatpush1.msra.mxu0 0.0
    %237 = vmatprep.subr.mxu0 0.0
    %238 = vmatpush1.msra.mxu0 0.0
    %239 = vmatprep.subr.mxu0 0.0
    %240 = vmatpush1.msra.mxu0 0.0
    %241 = vmatprep.subr.mxu0 0.0
    %242 = vmatpush1.msra.mxu0 0.0
    %243 = vmatprep.subr.mxu0 0.0
    %244 = vmatpush1.msra.mxu0 0.0
    %245 = vmatprep.subr.mxu0 0.0
    %246 = vmatpush1.msra.mxu0 0.0
    %247 = vmatprep.subr.mxu0 0.0
    %248 = vmatpush1.msra.mxu0 0.0
    %249 = vmatprep.subr.mxu0 0.0
    %250 = vmatpush1.msra.mxu0 0.0
    %251 = vmatprep.subr.mxu0 0.0
    %252 = vmatpush1.msra.mxu0 0.0
    %253 = vmatprep.subr.mxu0 0.0
    %254 = vmatpush1.msra.mxu0 0.0
    %255 = vmatprep.subr.mxu0 0.0
    %256 = vmatpush1.msra.mxu0 0.0
    %257 = vmatprep.subr.mxu0 0.0
    %258 = vmatpush1.msra.mxu0 0.0
    %259 = vmatprep.subr.mxu0 0.0
    %260 = vmatpush1.msra.mxu0 0.0
    %261 = vmatprep.mubr.f32.mxu0 0.0
    %262 = vmatmul.mubr.f32.gmra.mrb[0].mxu0 %v192
    %v263 = vpop.f32.mrb[0].mxu0
    %v264 = vadd.f32 %v196, %v263
    %v265 = vpop.f32.mrb[0].mxu0
    %266 = vdwg.mxu0
    %v267 = vxor.u32 %v264, 2147483648
    %v268 = vmul.f32 %v267, 1.442695
    %v269 = vpow.pop %v268
    %v270 = vadd.f32 %v269, 1.0
    %v271 = vrcp.pop %v270
    %v272 = vmul.f32 1.0, %v271
    %v273 = vmul.f32 %v264, %v272
    %v274 = vlaneseq
    %v275 = vshrl.u32 %v274, 7
    %v276 = vsub.s32 0, %v275
    %v277 = vrot.slane %v31, %v276
    %278 = vmatprep.subr.mxu0 0.0
    %279 = vmatpush1.msra.mxu0 %v48
    %280 = vmatprep.subr.mxu0 0.0
    %281 = vmatpush1.msra.mxu0 %v49
    %282 = vmatprep.subr.mxu0 0.0
    %283 = vmatpush1.msra.mxu0 %v50
    %284 = vmatprep.subr.mxu0 0.0
    %285 = vmatpush1.msra.mxu0 %v51
    %286 = vmatprep.subr.mxu0 0.0
    %287 = vmatpush1.msra.mxu0 %v52
    %288 = vmatprep.subr.mxu0 0.0
    %289 = vmatpush1.msra.mxu0 %v53
    %290 = vmatprep.subr.mxu0 0.0
    %291 = vmatpush1.msra.mxu0 %v54
    %292 = vmatprep.subr.mxu0 0.0
    %293 = vmatpush1.msra.mxu0 %v55
    %294 = vmatprep.subr.mxu0 0.0
    %295 = vmatpush1.msra.mxu0 %v56
    %296 = vmatprep.subr.mxu0 0.0
    %297 = vmatpush1.msra.mxu0 %v57
    %298 = vmatprep.subr.mxu0 0.0
    %299 = vmatpush1.msra.mxu0 %v58
    %300 = vmatprep.subr.mxu0 0.0
    %301 = vmatpush1.msra.mxu0 %v59
    %302 = vmatprep.subr.mxu0 0.0
    %303 = vmatpush1.msra.mxu0 %v60
    %304 = vmatprep.subr.mxu0 0.0
    %305 = vmatpush1.msra.mxu0 %v61
    %306 = vmatprep.subr.mxu0 0.0
    %307 = vmatpush1.msra.mxu0 %v62
    %308 = vmatprep.subr.mxu0 0.0
    %309 = vmatpush1.msra.mxu0 %v63
    %310 = vmatprep.subr.mxu0 0.0
    %311 = vmatpush1.msra.mxu0 0.0
    %312 = vmatprep.subr.mxu0 0.0
    %313 = vmatpush1.msra.mxu0 0.0
    %314 = vmatprep.subr.mxu0 0.0
    %315 = vmatpush1.msra.mxu0 0.0
    %316 = vmatprep.subr.mxu0 0.0
    %317 = vmatpush1.msra.mxu0 0.0
    %318 = vmatprep.subr.mxu0 0.0
    %319 = vmatpush1.msra.mxu0 0.0
    %320 = vmatprep.subr.mxu0 0.0
    %321 = vmatpush1.msra.mxu0 0.0
    %322 = vmatprep.subr.mxu0 0.0
    %323 = vmatpush1.msra.mxu0 0.0
    %324 = vmatprep.subr.mxu0 0.0
    %325 = vmatpush1.msra.mxu0 0.0
    %326 = vmatprep.subr.mxu0 0.0
    %327 = vmatpush1.msra.mxu0 0.0
    %328 = vmatprep.subr.mxu0 0.0
    %329 = vmatpush1.msra.mxu0 0.0
    %330 = vmatprep.subr.mxu0 0.0
    %331 = vmatpush1.msra.mxu0 0.0
    %332 = vmatprep.subr.mxu0 0.0
    %333 = vmatpush1.msra.mxu0 0.0
    %334 = vmatprep.subr.mxu0 0.0
    %335 = vmatpush1.msra.mxu0 0.0
    %336 = vmatprep.subr.mxu0 0.0
    %337 = vmatpush1.msra.mxu0 0.0
    %338 = vmatprep.subr.mxu0 0.0
    %339 = vmatpush1.msra.mxu0 0.0
    %340 = vmatprep.subr.mxu0 0.0
    %341 = vmatpush1.msra.mxu0 0.0
    %342 = vmatprep.mubr.f32.mxu0 0.0
    %343 = vmatmul.mubr.f32.gmra.mrb[0].mxu0 %v273
    %v344 = vpop.f32.mrb[0].mxu0
    %v345 = vadd.f32 %v277, %v344
    %v346 = vpop.f32.mrb[0].mxu0
    %347 = vdwg.mxu0
    %348 = vst [vmem:[#allocation5] sm:$0xff] %v345
    // Predicated region
    $region14: #{tpu_custom_call.1} parent=1 // pred_check
      _
    $region15: #{tpu_custom_call.1} parent=1 // pred_check_branch
      %350 = sbr.rel (0) target = $region17
    $region16: #{tpu_custom_call.1} parent=1 // pred_region
      %s352 = ssub.s32 128, 128
      %353 = vsyncadd [#allocation4], %s352
      %s355 = sshll.u32 [#allocation5], 4
      %s356 = int_to_ptr.vmem [resolvable:$true] %s355
      %358 = dma.vmem_to_hbm [thread:$0]  %s356, 128, %s2, [#allocation4]
    $region17: #{tpu_custom_call.1} parent=1 // pred_fallthru
      _
    // Predicated region
    $region18: #{tpu_custom_call.1} parent=1 // pred_check
      _
    $region19: #{tpu_custom_call.1} parent=1 // pred_check_branch
      %360 = sbr.rel (0) target = $region21
    $region20: #{tpu_custom_call.1} parent=1 // pred_region
      %361 = dma.done [#allocation4], 128
    $region21: #{tpu_custom_call.1} parent=1 // pred_fallthru
      _
    %362 = vsyncpa [#allocation3], 1
    %363 = vsyncpa [#allocation4], 1

</llo_original>
